<compile_context>
chip_gen: v7x
topology: tpu7x:2x2x1
jax: 0.10.0
libtpu: 0.0.40
codegen_flags: <defaults>
</compile_context>

<pallas_src>
import functools
import numpy as np
import jax
import jax.numpy as jnp
from jax.experimental import pallas as pl
from jax.experimental.pallas import tpu as pltpu


def _round_up(x, m):
    return ((x + m - 1) // m) * m


def _gelu(h, exact):
    if exact:
        # nn.GELU() default: 0.5 * x * (1 + erf(x / sqrt(2)))
        return 0.5 * h * (1.0 + jax.lax.erf(h * np.float32(1.0 / np.sqrt(2.0))))
    # tanh approximation (only used if explicitly requested)
    return jax.nn.gelu(h, approximate=True)


def _mlp_kernel(x_ref, w1_ref, b1_ref, w2_ref, b2_ref, o_ref, acc_ref, *,
                exact_gelu):
    """Fused Linear1 + GELU + Linear2 on one (token tile, hidden tile) block.

    x_ref  : (tile_n, d_in_p)        constant along the hidden grid axis
    w1_ref : (d_in_p, tile_hid)      streams along the hidden grid axis
    b1_ref : (1, tile_hid)           f32
    w2_ref : (tile_hid, d_out_p)     streams along the hidden grid axis
    b2_ref : (1, d_out_p)            f32
    o_ref  : (tile_n, d_out_p)       written once, at the last hidden step
    acc_ref: (tile_n, d_out_p) f32   persistent accumulator scratch
    """
    j = pl.program_id(1)

    @pl.when(j == 0)
    def _():
        acc_ref[...] = jnp.zeros_like(acc_ref)

    h = jnp.dot(x_ref[...], w1_ref[...], preferred_element_type=jnp.float32)
    h = h + b1_ref[...]                       # f32 bias / activation math
    h = _gelu(h, exact_gelu)
    h = h.astype(w2_ref.dtype)                # back to MXU input dtype
    acc_ref[...] += jnp.dot(h, w2_ref[...], preferred_element_type=jnp.float32)

    @pl.when(j == pl.num_programs(1) - 1)
    def _():
        o_ref[...] = (acc_ref[...] + b2_ref[...]).astype(o_ref.dtype)


def _choose_tiles(n_tokens, d_in_p, d_hid_128, d_out_p, itemsize,
                  target_tile_n=512, target_tile_hid=512):
    """Pick (tile_n, tile_hid, d_hid_p) fitting a ~24 MiB VMEM budget.

    Budgeted against ~24 MiB so it stays well inside v7x's 32 MiB default
    scoped VMEM (and trivially inside v5e/v6e's 128 MiB).
    """
    budget = 24 * 1024 * 1024
    tile_hid = min(target_tile_hid, d_hid_128)          # multiple of 128
    d_hid_p = _round_up(d_hid_128, tile_hid)

    # double-buffered weight/bias blocks (re-fetched per token tile)
    fixed = 2 * (d_in_p * tile_hid + tile_hid * d_out_p) * itemsize
    fixed += 2 * (tile_hid + d_out_p) * 4
    # per token row: double-buffered in/out blocks, f32 accumulator scratch,
    # f32 hidden-tile intermediate
    per_row = (2 * (d_in_p + d_out_p) * itemsize
               + d_out_p * 4
               + tile_hid * 4)
    avail = max(budget - fixed, 8 * per_row)
    tile_n = min(target_tile_n, avail // per_row)
    tile_n = max(8, (tile_n // 8) * 8)
    n_pad8 = _round_up(n_tokens, 8)
    tile_n = min(tile_n, n_pad8)
    # prefer >= 2 token tiles so the "parallel" axis can span both v7x TCs
    if tile_n >= n_pad8 and n_pad8 >= 16:
        tile_n = _round_up((n_pad8 + 1) // 2, 8)
    return tile_n, tile_hid, d_hid_p


def mlp_forward(x, w1, b1, w2, b2, *, exact_gelu=True, compute_dtype=None,
                target_tile_n=512, target_tile_hid=512):
    """Forward pass of the MLP module (dropout = identity).

    x : (..., hidden_size)
    w1: (mlp_dim*2, hidden_size)   PyTorch nn.Linear (out, in) layout
    b1: (mlp_dim*2,)
    w2: (hidden_size, mlp_dim*2)
    b2: (hidden_size,)
    returns (..., hidden_size)
    """
    orig_shape = x.shape
    d_in = orig_shape[-1]
    d_hid, d_in_w = w1.shape
    d_out, d_hid_w = w2.shape
    assert d_in_w == d_in and d_hid_w == d_hid and d_out == d_in

    cdt = jnp.dtype(compute_dtype) if compute_dtype is not None else x.dtype
    itemsize = jnp.dtype(cdt).itemsize

    # lane-dense padding of every feature dim to a multiple of 128
    d_in_p = _round_up(d_in, 128)
    d_hid_128 = _round_up(d_hid, 128)
    d_out_p = _round_up(d_out, 128)

    tokens = x.reshape(-1, d_in)
    n = tokens.shape[0]
    tile_n, tile_hid, d_hid_p = _choose_tiles(
        n, d_in_p, d_hid_128, d_out_p, itemsize, target_tile_n, target_tile_hid)
    n_p = _round_up(n, tile_n)
    grid = (n_p // tile_n, d_hid_p // tile_hid)

    tokens_p = jnp.pad(tokens.astype(cdt), ((0, n_p - n), (0, d_in_p - d_in)))
    w1_p = jnp.pad(jnp.transpose(w1).astype(cdt),
                   ((0, d_in_p - d_in), (0, d_hid_p - d_hid)))
    w2_p = jnp.pad(jnp.transpose(w2).astype(cdt),
                   ((0, d_hid_p - d_hid), (0, d_out_p - d_out)))
    b1_p = jnp.pad(b1.astype(jnp.float32), (0, d_hid_p - d_hid)).reshape(1, d_hid_p)
    b2_p = jnp.pad(b2.astype(jnp.float32), (0, d_out_p - d_out)).reshape(1, d_out_p)

    # explicit VMEM limit (v7x: 64 MiB physical / 32 MiB default scoped)
    w_bytes = 2 * (d_in_p * tile_hid + tile_hid * d_out_p) * itemsize
    io_bytes = 2 * tile_n * (d_in_p + d_out_p) * itemsize
    tmp_bytes = tile_n * (d_out_p + tile_hid) * 4
    vmem_limit = int(min(64 * 2**20,
                         max(32 * 2**20,
                             2 * (w_bytes + io_bytes + tmp_bytes))))

    n_tok_tiles = grid[0]
    cost = pl.CostEstimate(
        flops=2 * n_p * (d_in_p * d_hid_p + d_hid_p * d_out_p),
        transcendentals=n_p * d_hid_p,
        bytes_accessed=(n_p * (d_in_p + d_out_p) * itemsize
                        + n_tok_tiles * (d_in_p * d_hid_p
                                         + d_hid_p * d_out_p) * itemsize
                        + (d_hid_p + d_out_p) * 4),
    )

    out_p = pl.pallas_call(
        functools.partial(_mlp_kernel, exact_gelu=exact_gelu),
        out_shape=jax.ShapeDtypeStruct((n_p, d_out_p), x.dtype),
        grid_spec=pltpu.PrefetchScalarGridSpec(
            num_scalar_prefetch=0,
            grid=grid,
            in_specs=[
                pl.BlockSpec((tile_n, d_in_p), lambda i, j: (i, 0)),
                pl.BlockSpec((d_in_p, tile_hid), lambda i, j: (0, j)),
                pl.BlockSpec((1, tile_hid), lambda i, j: (0, j)),
                pl.BlockSpec((tile_hid, d_out_p), lambda i, j: (j, 0)),
                pl.BlockSpec((1, d_out_p), lambda i, j: (0, 0)),
            ],
            out_specs=pl.BlockSpec((tile_n, d_out_p), lambda i, j: (i, 0)),
            scratch_shapes=[pltpu.VMEM((tile_n, d_out_p), jnp.float32)],
        ),
        compiler_params=pltpu.CompilerParams(
            dimension_semantics=("parallel", "arbitrary"),
            vmem_limit_bytes=vmem_limit,
        ),
        cost_estimate=cost,
    )(tokens_p, w1_p, b1_p, w2_p, b2_p)

    out = out_p[:n, :d_out]
    return out.reshape(*orig_shape[:-1], d_out)


def _reference(x, w1, b1, w2, b2, *, exact_gelu=True):
    """Pure-JAX reference of the same forward (dropout = identity)."""
    h = jnp.einsum("...i,oi->...o", x.astype(jnp.float32),
                   w1.astype(jnp.float32)) + b1
    h = jax.nn.gelu(h, approximate=not exact_gelu)
    y = jnp.einsum("...i,oi->...o", h, w2.astype(jnp.float32)) + b2
    return y


if __name__ == "__main__":
    key = jax.random.PRNGKey(0)
    k1, k2, k3, k4, k5 = jax.random.split(key, 5)

    # small shapes consistent with the module: tokens x hidden, mlp_dim*2 wide
    batch, seq, hidden_size, mlp_dim = 2, 64, 32, 64
    d_hid = 2 * mlp_dim                     # 128

    x = jax.random.normal(k1, (batch, seq, hidden_size), dtype=jnp.float32)
    lim1 = 1.0 / np.sqrt(hidden_size)
    lim2 = 1.0 / np.sqrt(d_hid)
    w1 = jax.random.uniform(k2, (d_hid, hidden_size), jnp.float32, -lim1, lim1)
    b1 = jax.random.uniform(k3, (d_hid,), jnp.float32, -lim1, lim1)
    w2 = jax.random.uniform(k4, (hidden_size, d_hid), jnp.float32, -lim2, lim2)
    b2 = jax.random.uniform(k5, (hidden_size,), jnp.float32, -lim2, lim2)

    out = jax.block_until_ready(
        mlp_forward(x, w1, b1, w2, b2, exact_gelu=True))
    ref = jax.block_until_ready(
        _reference(x, w1, b1, w2, b2, exact_gelu=True))

    assert out.shape == (batch, seq, hidden_size), out.shape
    # tolerance covers possible MXU f32 pass-count differences vs XLA matmul
    np.testing.assert_allclose(np.asarray(out), np.asarray(ref),
                               rtol=5e-3, atol=5e-3)

    print("KERNEL_OK")
</pallas_src>

<mosaic_0001>
module attributes {stable_mosaic.version = 11 : i64} {
  func.func @_mlp_kernel(%arg0: i32, %arg1: i32, %arg2: memref<64x128xf32, #tpu.memory_space<vmem>>, %arg3: memref<128x128xf32, #tpu.memory_space<vmem>>, %arg4: memref<1x128xf32, #tpu.memory_space<vmem>>, %arg5: memref<128x128xf32, #tpu.memory_space<vmem>>, %arg6: memref<1x128xf32, #tpu.memory_space<vmem>>, %arg7: memref<64x128xf32, #tpu.memory_space<vmem>>, %arg8: memref<64x128xf32, #tpu.memory_space<vmem>>) attributes {dimension_semantics = [#tpu.dimension_semantics<parallel>, #tpu.dimension_semantics<arbitrary>], iteration_bounds = array<i64: 2, 1>, scalar_prefetch = 0 : i64, scratch_operands = 1 : i64, tpu.core_type = #tpu.core_type<tc>, window_params = [{transform_indices = @transform_0, window_bounds = array<i64: 64, 128>}, {transform_indices = @transform_1, window_bounds = array<i64: 128, 128>}, {transform_indices = @transform_2, window_bounds = array<i64: 1, 128>}, {transform_indices = @transform_3, window_bounds = array<i64: 128, 128>}, {pipeline_mode = #tpu.pipeline_mode<synchronous>, transform_indices = @transform_4, window_bounds = array<i64: 1, 128>}, {transform_indices = @transform_5, window_bounds = array<i64: 64, 128>}]} {
    %c0_i32 = arith.constant 0 : i32
    %0 = arith.cmpi eq, %arg1, %c0_i32 : i32
    %1 = arith.extui %0 : i1 to i32
    %c0_i32_0 = arith.constant 0 : i32
    %2 = arith.cmpi ne, %1, %c0_i32_0 : i32
    scf.if %2 {
      %cst_18 = arith.constant 0.000000e+00 : f32
      %25 = vector.broadcast %cst_18 : f32 to vector<64x128xf32>
      %c0_19 = arith.constant 0 : index
      %c0_20 = arith.constant 0 : index
      %26 = vector.load %arg8[%c0_19, %c0_20] : memref<64x128xf32, #tpu.memory_space<vmem>>, vector<64x128xf32>
      tpu.vector_store %arg8[%c0_19, %c0_20], %25 {strides = array<i32>} : memref<64x128xf32, #tpu.memory_space<vmem>>, vector<64x128xf32>,
    } else {
    }
    %c0 = arith.constant 0 : index
    %c0_1 = arith.constant 0 : index
    %3 = vector.load %arg2[%c0, %c0_1] : memref<64x128xf32, #tpu.memory_space<vmem>>, vector<64x128xf32>
    %c0_2 = arith.constant 0 : index
    %c0_3 = arith.constant 0 : index
    %4 = vector.load %arg3[%c0_2, %c0_3] : memref<128x128xf32, #tpu.memory_space<vmem>>, vector<128x128xf32>
    %cst = arith.constant dense<0.000000e+00> : vector<64x128xf32>
    %5 = tpu.matmul %3, %4, %cst {dimension_numbers = #tpu.dot_dimension_numbers<[1], [0], [0], [1], [0, 0, 1, 1], [], []>} : vector<64x128xf32>, vector<128x128xf32>, vector<64x128xf32> -> vector<64x128xf32>
    %c0_4 = arith.constant 0 : index
    %c0_5 = arith.constant 0 : index
    %6 = vector.load %arg4[%c0_4, %c0_5] : memref<1x128xf32, #tpu.memory_space<vmem>>, vector<1x128xf32>
    %7 = vector.broadcast %6 : vector<1x128xf32> to vector<64x128xf32>
    %8 = arith.addf %5, %7 : vector<64x128xf32>
    %cst_6 = arith.constant 5.000000e-01 : f32
    %9 = vector.broadcast %cst_6 : f32 to vector<64x128xf32>
    %10 = arith.mulf %9, %8 : vector<64x128xf32>
    %cst_7 = arith.constant 0.707106769 : f32
    %11 = vector.broadcast %cst_7 : f32 to vector<64x128xf32>
    %12 = arith.mulf %8, %11 : vector<64x128xf32>
    %13 = math.erf %12 : vector<64x128xf32>
    %cst_8 = arith.constant 1.000000e+00 : f32
    %14 = vector.broadcast %cst_8 : f32 to vector<64x128xf32>
    %15 = arith.addf %14, %13 : vector<64x128xf32>
    %16 = arith.mulf %10, %15 : vector<64x128xf32>
    %c0_9 = arith.constant 0 : index
    %c0_10 = arith.constant 0 : index
    %17 = vector.load %arg8[%c0_9, %c0_10] : memref<64x128xf32, #tpu.memory_space<vmem>>, vector<64x128xf32>
    %c0_11 = arith.constant 0 : index
    %c0_12 = arith.constant 0 : index
    %18 = vector.load %arg5[%c0_11, %c0_12] : memref<128x128xf32, #tpu.memory_space<vmem>>, vector<128x128xf32>
    %cst_13 = arith.constant dense<0.000000e+00> : vector<64x128xf32>
    %19 = tpu.matmul %16, %18, %cst_13 {dimension_numbers = #tpu.dot_dimension_numbers<[1], [0], [0], [1], [0, 0, 1, 1], [], []>} : vector<64x128xf32>, vector<128x128xf32>, vector<64x128xf32> -> vector<64x128xf32>
    %20 = arith.addf %17, %19 : vector<64x128xf32>
    %c0_14 = arith.constant 0 : index
    %c0_15 = arith.constant 0 : index
    %21 = vector.load %arg8[%c0_14, %c0_15] : memref<64x128xf32, #tpu.memory_space<vmem>>, vector<64x128xf32>
    tpu.vector_store %arg8[%c0_14, %c0_15], %20 {strides = array<i32>} : memref<64x128xf32, #tpu.memory_space<vmem>>, vector<64x128xf32>,
    %c0_i32_16 = arith.constant 0 : i32
    %22 = arith.cmpi eq, %arg1, %c0_i32_16 : i32
    %23 = arith.extui %22 : i1 to i32
    %c0_i32_17 = arith.constant 0 : i32
    %24 = arith.cmpi ne, %23, %c0_i32_17 : i32
    scf.if %24 {
      %c0_18 = arith.constant 0 : index
      %c0_19 = arith.constant 0 : index
      %25 = vector.load %arg8[%c0_18, %c0_19] : memref<64x128xf32, #tpu.memory_space<vmem>>, vector<64x128xf32>
      %c0_20 = arith.constant 0 : index
      %c0_21 = arith.constant 0 : index
      %26 = vector.load %arg6[%c0_20, %c0_21] : memref<1x128xf32, #tpu.memory_space<vmem>>, vector<1x128xf32>
      %27 = vector.broadcast %26 : vector<1x128xf32> to vector<64x128xf32>
      %28 = arith.addf %25, %27 : vector<64x128xf32>
      %c0_22 = arith.constant 0 : index
      %c0_23 = arith.constant 0 : index
      %29 = vector.load %arg7[%c0_22, %c0_23] : memref<64x128xf32, #tpu.memory_space<vmem>>, vector<64x128xf32>
      tpu.vector_store %arg7[%c0_22, %c0_23], %28 {strides = array<i32>} : memref<64x128xf32, #tpu.memory_space<vmem>>, vector<64x128xf32>,
    } else {
    }
    return
  }
  func.func @transform_0(%arg0: i32, %arg1: i32) -> (i32, i32) {
    %c0_i32 = arith.constant 0 : i32
    %c0_i32_0 = arith.constant 0 : i32
    return %arg0, %c0_i32 : i32, i32
  }
  func.func @transform_1(%arg0: i32, %arg1: i32) -> (i32, i32) {
    %c0_i32 = arith.constant 0 : i32
    %c0_i32_0 = arith.constant 0 : i32
    return %c0_i32, %arg1 : i32, i32
  }
  func.func @transform_2(%arg0: i32, %arg1: i32) -> (i32, i32) {
    %c0_i32 = arith.constant 0 : i32
    %c0_i32_0 = arith.constant 0 : i32
    return %c0_i32, %arg1 : i32, i32
  }
  func.func @transform_3(%arg0: i32, %arg1: i32) -> (i32, i32) {
    %c0_i32 = arith.constant 0 : i32
    %c0_i32_0 = arith.constant 0 : i32
    return %arg1, %c0_i32 : i32, i32
  }
  func.func @transform_4(%arg0: i32, %arg1: i32) -> (i32, i32) {
    %c0_i32 = arith.constant 0 : i32
    %c0_i32_0 = arith.constant 0 : i32
    %c0_i32_1 = arith.constant 0 : i32
    return %c0_i32, %c0_i32_0 : i32, i32
  }
  func.func @transform_5(%arg0: i32, %arg1: i32) -> (i32, i32) {
    %c0_i32 = arith.constant 0 : i32
    %c0_i32_0 = arith.constant 0 : i32
    return %arg0, %c0_i32 : i32, i32
  }
}

</mosaic_0001>

<llo_original>
// kernel: tpu_custom_call.1
$region0: #{tpu_custom_call.1}
  #allocation0 [shape = 'u32[]', space=smem, size = 0x4, offset = 0x4, fixed_abs, tag = 'smem constant byte address 0x4 - core index']
  #allocation1 [shape = 'u32[144,128]{1,0:T(1,128)}', space=vmem, size = 0x12000, scoped, tag = 'internal scratch']
  #allocation2 [shape = 'f32[64,128]{1,0:T(8,128)}', space=vmem, size = 0x8000, scoped, tag = 'scratch operand']
  %s0 = inlined_call_operand.hbm [shape: f32[128,128], index: 0, kind: input, shape index: {}]
  %s1 = inlined_call_operand.hbm [shape: f32[128,128], index: 1, kind: input, shape index: {}]
  %s2 = inlined_call_operand.vmem [shape: f32[1,128], index: 2, kind: input, shape index: {}]
  %s3 = inlined_call_operand.hbm [shape: f32[128,128], index: 3, kind: input, shape index: {}]
  %s4 = inlined_call_operand.vmem [shape: f32[1,128], index: 4, kind: input, shape index: {}]
  %s5 = inlined_call_operand.hbm [shape: f32[128,128], index: 5, kind: output, shape index: {}]
  %s6 = sld [smem:[#allocation0]]
  $region73: #{tpu_custom_call.1} parent=0
    _
  %s8 = ssub.s32 1, %s6
  %s9 = scalar_select 0, %s8, %s6
  $region1: #{tpu_custom_call.1} parent=0
    #allocation3 [shape = 'u8[65536]{0}', space=vmem, size = 0x10000, scoped, tag = 'input window, operand 0']
    #allocation4 [shape = 's32[2]{0}', space=sflag, size = 0x8, scoped, tag = 'scoped memory for tpu_custom_call.1']
    #allocation5 [shape = 's32[2]{0}', space=sflag, size = 0x8, scoped, tag = 'scoped memory for tpu_custom_call.1']
    #allocation6 [shape = 'u8[65536]{0}', space=vmem, size = 0x10000, scoped, tag = 'input window, operand 1, single buffered']
    #allocation7 [shape = 's32[1]{0}', space=sflag, size = 0x4, scoped, tag = 'scoped memory for tpu_custom_call.1']
    #allocation8 [shape = 'u8[65536]{0}', space=vmem, size = 0x10000, scoped, tag = 'input window, operand 3, single buffered']
    #allocation9 [shape = 'u8[65536]{0}', space=vmem, size = 0x10000, scoped, tag = 'output window, operand 0']
    %10 = vsyncpa [#allocation4], 0
    %s11 = scalar_lea.sflag [#allocation4], 1
    %12 = vsyncpa %s11, 0
    %13 = vsyncpa [#allocation7], 0
    %14 = vsyncpa [#allocation5], 0
    %s15 = scalar_lea.sflag [#allocation5], 1
    %16 = vsyncpa %s15, 0
    loop: start=0, step=1, limit=4
    $region2: #{tpu_custom_call.1} parent=1 // loop_pre_header
      _
    $region3: #{tpu_custom_call.1} parent=1 // loop_header
      %s18 = sphi 0, %s22
      %p19 = scmp.ge.s32.totalorder %s18, 4
      %s25 = sphi 0, %s37
      %s26 = sphi 0, %s33
      %s27 = sphi 0, %s25
      %s28 = sphi 0, %s26
      %s29 = sphi 0, %s27
      %s30 = sphi 0, %s28
      %s40 = sphi 0, %s42
      %s43 = sphi 0, %s40
      %s44 = sphi 0, %s43
      %s60 = sphi 0, %s44
      %s66 = sphi 0, %s68
      %s69 = sphi 0, %s66
      %s70 = sphi 0, %s69
      %s86 = sphi 0, %s70
      %s92 = sphi 0, %s94
      %s95 = sphi 0, %s92
      %s96 = sphi 0, %s95
      %s112 = sphi 0, %s96
      %s118 = sphi 0, %s120
      %s121 = sphi 0, %s118
      %s122 = sphi 0, %s121
      %s138 = sphi 0, %s122
      %s142 = sphi 0, %s142
      %s144 = sphi 0, %s142
      %s145 = sphi 0, %s144
      %s159 = sphi 0, %s145
      %s165 = sphi 0, %s167
      %s168 = sphi 0, %s165
      %s169 = sphi 0, %s168
      %s185 = sphi 0, %s169
    $region4: #{tpu_custom_call.1} parent=1 // loop_header_branch
      %21 = sbr.rel (%p19) target = $region8
    $region5: #{tpu_custom_call.1} parent=1 // loop_body
      %s23 = ssub.s32 %s18, 1
      %s24 = ssub.s32 %s18, 2
      %s31 = sadd.s32 1, %s26
      %p32 = scmp.ge.s32.totalorder %s31, 1
      %s33 = scalar_select %p32, 0, %s31
      %s34 = sadd.s32 1, %s25
      %s35 = scalar_select %p32, %s34, %s25
      %p36 = scmp.ge.s32.totalorder %s35, 2
      %s37 = scalar_select %p36, 0, %s35
      %s38 = ssub.s32 %s25, %s37
      %p39 = scmp.eq.s32.totalorder %s38, 0
      %s41 = sadd.s32 %s40, 1
      %s42 = scalar_select %p39, %s40, %s41
      %p45 = pneg %p39
      %p46 = scmp.eq.s32.totalorder %s18, 1
      %p47 = por %p45, %p46
      %p48 = scmp.ne.s32.totalorder %s40, %s43
      %p49 = scmp.eq.s32.totalorder %s18, 0
      %p50 = por %p48, %p49
      %p51 = scmp.ne.s32.totalorder %s40, %s43
      %p52 = scmp.eq.s32.totalorder %s23, 1
      %p53 = por %p51, %p52
      %p54 = scmp.ne.s32.totalorder %s43, %s44
      %p55 = scmp.eq.s32.totalorder %s23, 0
      %p56 = por %p54, %p55
      %p57 = scmp.ne.s32.totalorder %s43, %s44
      %p58 = scmp.eq.s32.totalorder %s24, 1
      %p59 = por %p57, %p58
      %p61 = scmp.ne.s32.totalorder %s44, %s60
      %p62 = scmp.eq.s32.totalorder %s24, 0
      %p63 = por %p61, %p62
      %s64 = ssub.s32 %s26, %s33
      %p65 = scmp.eq.s32.totalorder %s64, 0
      %s67 = sadd.s32 %s66, 1
      %s68 = scalar_select %p65, %s66, %s67
      %p71 = pneg %p65
      %p72 = scmp.eq.s32.totalorder %s18, 1
      %p73 = por %p71, %p72
      %p74 = scmp.ne.s32.totalorder %s66, %s69
      %p75 = scmp.eq.s32.totalorder %s18, 0
      %p76 = por %p74, %p75
      %p77 = scmp.ne.s32.totalorder %s66, %s69
      %p78 = scmp.eq.s32.totalorder %s23, 1
      %p79 = por %p77, %p78
      %p80 = scmp.ne.s32.totalorder %s69, %s70
      %p81 = scmp.eq.s32.totalorder %s23, 0
      %p82 = por %p80, %p81
      %p83 = scmp.ne.s32.totalorder %s69, %s70
      %p84 = scmp.eq.s32.totalorder %s24, 1
      %p85 = por %p83, %p84
      %p87 = scmp.ne.s32.totalorder %s70, %s86
      %p88 = scmp.eq.s32.totalorder %s24, 0
      %p89 = por %p87, %p88
      %s90 = ssub.s32 %s26, %s33
      %p91 = scmp.eq.s32.totalorder %s90, 0
      %s93 = sadd.s32 %s92, 1
      %s94 = scalar_select %p91, %s92, %s93
      %p97 = pneg %p91
      %p98 = scmp.eq.s32.totalorder %s18, 1
      %p99 = por %p97, %p98
      %p100 = scmp.ne.s32.totalorder %s92, %s95
      %p101 = scmp.eq.s32.totalorder %s18, 0
      %p102 = por %p100, %p101
      %p103 = scmp.ne.s32.totalorder %s92, %s95
      %p104 = scmp.eq.s32.totalorder %s23, 1
      %p105 = por %p103, %p104
      %p106 = scmp.ne.s32.totalorder %s95, %s96
      %p107 = scmp.eq.s32.totalorder %s23, 0
      %p108 = por %p106, %p107
      %p109 = scmp.ne.s32.totalorder %s95, %s96
      %p110 = scmp.eq.s32.totalorder %s24, 1
      %p111 = por %p109, %p110
      %p113 = scmp.ne.s32.totalorder %s96, %s112
      %p114 = scmp.eq.s32.totalorder %s24, 0
      %p115 = por %p113, %p114
      %s116 = ssub.s32 %s26, %s33
      %p117 = scmp.eq.s32.totalorder %s116, 0
      %s119 = sadd.s32 %s118, 1
      %s120 = scalar_select %p117, %s118, %s119
      %p123 = pneg %p117
      %p124 = scmp.eq.s32.totalorder %s18, 1
      %p125 = por %p123, %p124
      %p126 = scmp.ne.s32.totalorder %s118, %s121
      %p127 = scmp.eq.s32.totalorder %s18, 0
      %p128 = por %p126, %p127
      %p129 = scmp.ne.s32.totalorder %s118, %s121
      %p130 = scmp.eq.s32.totalorder %s23, 1
      %p131 = por %p129, %p130
      %p132 = scmp.ne.s32.totalorder %s121, %s122
      %p133 = scmp.eq.s32.totalorder %s23, 0
      %p134 = por %p132, %p133
      %p135 = scmp.ne.s32.totalorder %s121, %s122
      %p136 = scmp.eq.s32.totalorder %s24, 1
      %p137 = por %p135, %p136
      %p139 = scmp.ne.s32.totalorder %s122, %s138
      %p140 = scmp.eq.s32.totalorder %s24, 0
      %p141 = por %p139, %p140
      %s143 = sadd.s32 %s142, 1
      %p146 = scmp.eq.s32.totalorder %s18, 1
      %p147 = scmp.ne.s32.totalorder %s142, %s144
      %p148 = scmp.eq.s32.totalorder %s18, 0
      %p149 = por %p147, %p148
      %p150 = scmp.ne.s32.totalorder %s142, %s144
      %p151 = scmp.eq.s32.totalorder %s23, 1
      %p152 = por %p150, %p151
      %p153 = scmp.ne.s32.totalorder %s144, %s145
      %p154 = scmp.eq.s32.totalorder %s23, 0
      %p155 = por %p153, %p154
      %p156 = scmp.ne.s32.totalorder %s144, %s145
      %p157 = scmp.eq.s32.totalorder %s24, 1
      %p158 = por %p156, %p157
      %p160 = scmp.ne.s32.totalorder %s145, %s159
      %p161 = scmp.eq.s32.totalorder %s24, 0
      %p162 = por %p160, %p161
      %s163 = ssub.s32 %s25, %s37
      %p164 = scmp.eq.s32.totalorder %s163, 0
      %s166 = sadd.s32 %s165, 1
      %s167 = scalar_select %p164, %s165, %s166
      %p170 = pneg %p164
      %p171 = scmp.eq.s32.totalorder %s18, 1
      %p172 = por %p170, %p171
      %p173 = scmp.ne.s32.totalorder %s165, %s168
      %p174 = scmp.eq.s32.totalorder %s18, 0
      %p175 = por %p173, %p174
      %p176 = scmp.ne.s32.totalorder %s165, %s168
      %p177 = scmp.eq.s32.totalorder %s23, 1
      %p178 = por %p176, %p177
      %p179 = scmp.ne.s32.totalorder %s168, %s169
      %p180 = scmp.eq.s32.totalorder %s23, 0
      %p181 = por %p179, %p180
      %p182 = scmp.ne.s32.totalorder %s168, %s169
      %p183 = scmp.eq.s32.totalorder %s24, 1
      %p184 = por %p182, %p183
      %p186 = scmp.ne.s32.totalorder %s169, %s185
      %p187 = scmp.eq.s32.totalorder %s24, 0
      %p188 = por %p186, %p187
      %p189 = scmp.le.s32.totalorder 1, %s18
      %p190 = scmp.lt.s32.totalorder %s18, 3
      %p191 = pnand %p189, %p190
      %p192 = pneg %p191
      // Predicated region
      $region9: #{tpu_custom_call.1} parent=5 // pred_check
        _
      $region10: #{tpu_custom_call.1} parent=5 // pred_check_branch
        %194 = sbr.rel (%p191) target = $region12
      $region11: #{tpu_custom_call.1} parent=5 // pred_region
        %s195 = ssub.s32 %s18, 1
        // Predicated region
        $region13: #{tpu_custom_call.1} parent=11 // pred_check
          %p196 = pneg %p82
        $region14: #{tpu_custom_call.1} parent=11 // pred_check_branch
          %198 = sbr.rel (%p196) target = $region16
        $region15: #{tpu_custom_call.1} parent=11 // pred_region
          %s200 = ssub.s32 2048, 2048
          %201 = vsyncadd [#allocation7], %s200
          %s202 = smul.addr %s28, 128
          %s203 = scalar_lea.hbm %s1, %s202
          %s204 = sshll.u32 [#allocation6], 4
          %s205 = int_to_ptr.vmem [resolvable:$true] %s204
          %210 = dma.hbm_to_vmem [thread:$0]  %s203, 2048, %s205, [#allocation7], 128, 128, 8
        $region16: #{tpu_custom_call.1} parent=11 // pred_fallthru
          _
        // Predicated region
        $region17: #{tpu_custom_call.1} parent=11 // pred_check
          %p211 = pneg %p108
        $region18: #{tpu_custom_call.1} parent=11 // pred_check_branch
          %213 = sbr.rel (%p211) target = $region20
        $region19: #{tpu_custom_call.1} parent=11 // pred_region
          %p214 = scmp.lt.s32.totalorder %s28, 0
          %s215 = scalar_select %p214, %s28, 0
          %s216 = scalar_lea.vmem %s2, %s215
        $region20: #{tpu_custom_call.1} parent=11 // pred_fallthru
          _
        // Predicated region
        $region21: #{tpu_custom_call.1} parent=11 // pred_check
          %p217 = pneg %p134
        $region22: #{tpu_custom_call.1} parent=11 // pred_check_branch
          %219 = sbr.rel (%p217) target = $region24
        $region23: #{tpu_custom_call.1} parent=11 // pred_region
          %s220 = smul.u32 16, %s28
          %s222 = ssub.s32 2048, 2048
          %223 = vsyncadd [#allocation7], %s222
          %s224 = smul.addr %s220, 128
          %s225 = scalar_lea.hbm %s3, %s224
          %s226 = sshll.u32 [#allocation8], 4
          %s227 = int_to_ptr.vmem [resolvable:$true] %s226
          %232 = dma.hbm_to_vmem [thread:$0]  %s225, 2048, %s227, [#allocation7], 128, 128, 8
        $region24: #{tpu_custom_call.1} parent=11 // pred_fallthru
          _
        // Predicated region
        $region25: #{tpu_custom_call.1} parent=11 // pred_check
          %p233 = pneg %p155
        $region26: #{tpu_custom_call.1} parent=11 // pred_check_branch
          %235 = sbr.rel (%p233) target = $region28
        $region27: #{tpu_custom_call.1} parent=11 // pred_region
          _
        $region28: #{tpu_custom_call.1} parent=11 // pred_fallthru
          _
      $region12: #{tpu_custom_call.1} parent=5 // pred_fallthru
        _
      %p236 = scmp.lt.s32.totalorder %s18, 2
      // Predicated region
      $region29: #{tpu_custom_call.1} parent=5 // pred_check
        %p237 = pneg %p236
      $region30: #{tpu_custom_call.1} parent=5 // pred_check_branch
        %239 = sbr.rel (%p237) target = $region32
      $region31: #{tpu_custom_call.1} parent=5 // pred_region
        // Predicated region
        $region33: #{tpu_custom_call.1} parent=31 // pred_check
          %p240 = pneg %p50
        $region34: #{tpu_custom_call.1} parent=31 // pred_check_branch
          %242 = sbr.rel (%p240) target = $region36
        $region35: #{tpu_custom_call.1} parent=31 // pred_region
          %s243 = sand.u32 %s40, 1
          %s244 = scalar_lea.sflag [#allocation4], %s243
          %s245 = sand.u32 %s40, 1
          %s246 = smul.addr %s245, 64
          %s247 = scalar_lea.vmem [#allocation3], %s246
          %s248 = smul.u32 8, %s25
          %s250 = ssub.s32 1024, 1024
          %251 = vsyncadd %s244, %s250
          %s252 = smul.addr %s248, 128
          %s253 = scalar_lea.hbm %s0, %s252
          %s254 = sshll.u32 %s247, 4
          %s255 = int_to_ptr.vmem [resolvable:$true] %s254
          %260 = dma.hbm_to_vmem [thread:$0]  %s253, 1024, %s255, %s244, 128, 128, 8
        $region36: #{tpu_custom_call.1} parent=31 // pred_fallthru
          _
      $region32: #{tpu_custom_call.1} parent=5 // pred_fallthru
        _
      %p261 = scmp.le.s32.totalorder 1, %s18
      %p262 = scmp.lt.s32.totalorder %s18, 3
      %p263 = pnand %p261, %p262
      %p264 = pneg %p263
      // Predicated region
      $region37: #{tpu_custom_call.1} parent=5 // pred_check
        _
      $region38: #{tpu_custom_call.1} parent=5 // pred_check_branch
        %266 = sbr.rel (%p263) target = $region40
      $region39: #{tpu_custom_call.1} parent=5 // pred_region
        %s267 = ssub.s32 %s18, 1
        %s268 = sand.u32 %s43, 1
        %s269 = scalar_lea.sflag [#allocation4], %s268
        %s270 = sand.u32 %s43, 1
        %s271 = smul.addr %s270, 64
        %s272 = scalar_lea.vmem [#allocation3], %s271
        // Predicated region
        $region41: #{tpu_custom_call.1} parent=39 // pred_check
          %p273 = pneg %p56
        $region42: #{tpu_custom_call.1} parent=39 // pred_check_branch
          %275 = sbr.rel (%p273) target = $region44
        $region43: #{tpu_custom_call.1} parent=39 // pred_region
          %276 = dma.done %s269, 1024
        $region44: #{tpu_custom_call.1} parent=39 // pred_fallthru
          _
        // Predicated region
        $region45: #{tpu_custom_call.1} parent=39 // pred_check
          %p277 = pneg %p82
        $region46: #{tpu_custom_call.1} parent=39 // pred_check_branch
          %279 = sbr.rel (%p277) target = $region48
        $region47: #{tpu_custom_call.1} parent=39 // pred_region
          %280 = dma.done [#allocation7], 2048
        $region48: #{tpu_custom_call.1} parent=39 // pred_fallthru
          _
        // Predicated region
        $region49: #{tpu_custom_call.1} parent=39 // pred_check
          %p281 = pneg %p134
        $region50: #{tpu_custom_call.1} parent=39 // pred_check_branch
          %283 = sbr.rel (%p281) target = $region52
        $region51: #{tpu_custom_call.1} parent=39 // pred_region
          %284 = dma.done [#allocation7], 2048
        $region52: #{tpu_custom_call.1} parent=39 // pred_fallthru
          _
        %s285 = sand.u32 %s43, 1
        %s286 = scalar_lea.sflag [#allocation4], %s285
        %s287 = sand.u32 %s43, 1
        %s288 = smul.addr %s287, 64
        %s289 = scalar_lea.vmem [#allocation3], %s288
        %p290 = pneg %p56
        %p291 = pneg %p53
        %p292 = pneg %p82
        %p293 = pneg %p79
        %p294 = scmp.lt.s32.totalorder %s28, 0
        %s295 = scalar_select %p294, %s28, 0
        %s296 = scalar_lea.vmem %s2, %s295
        %p297 = pneg %p108
        %p298 = pneg %p105
        %p299 = pneg %p134
        %p300 = pneg %p131
        %p301 = pneg %p155
        %p302 = pneg %p152
        %p303 = pneg %p181
        %p304 = pneg %p178
        %s305 = sand.u32 %s168, 1
        %s306 = scalar_lea.sflag [#allocation5], %s305
        %s307 = sand.u32 %s168, 1
        %s308 = smul.addr %s307, 64
        %s309 = scalar_lea.vmem [#allocation9], %s308
        %s310 = smul.u32 8, %s27
        %p311 = scmp.lt.s32.totalorder %s28, 0
        %s312 = scalar_select %p311, %s28, 0
        %s313 = scalar_lea.vmem %s2, %s312
        %s314 = smul.u32 16, %s28
        %s315 = smul.u32 8, %s27
        %p316 = scmp.eq.s32.totalorder %s28, 0
        // Predicated region
        $region53: #{tpu_custom_call.1} parent=39 // pred_check
          %p317 = pneg %p316
        $region54: #{tpu_custom_call.1} parent=39 // pred_check_branch
          %319 = sbr.rel (%p317) target = $region56
        $region55: #{tpu_custom_call.1} parent=39 // pred_region
          %320 = vst [vmem:[#allocation2] sm:$0xff] 0.0
          %321 = vst [vmem:[#allocation2 + $0x8] sm:$0xff] 0.0
          %322 = vst [vmem:[#allocation2 + $0x10] sm:$0xff] 0.0
          %323 = vst [vmem:[#allocation2 + $0x18] sm:$0xff] 0.0
          %324 = vst [vmem:[#allocation2 + $0x20] sm:$0xff] 0.0
          %325 = vst [vmem:[#allocation2 + $0x28] sm:$0xff] 0.0
          %326 = vst [vmem:[#allocation2 + $0x30] sm:$0xff] 0.0
          %327 = vst [vmem:[#allocation2 + $0x38] sm:$0xff] 0.0
        $region56: #{tpu_custom_call.1} parent=39 // pred_fallthru
          _
        %v328 = vld [vmem:[%s272] sm:$0xff]
        %v329 = vld [vmem:[%s272 + $0x8] sm:$0xff]
        %v330 = vld [vmem:[%s272 + $0x10] sm:$0xff]
        %v331 = vld [vmem:[%s272 + $0x18] sm:$0xff]
        %v332 = vld [vmem:[%s272 + $0x20] sm:$0xff]
        %v333 = vld [vmem:[%s272 + $0x28] sm:$0xff]
        %v334 = vld [vmem:[%s272 + $0x30] sm:$0xff]
        %v335 = vld [vmem:[%s272 + $0x38] sm:$0xff]
        %v336 = vld [vmem:[#allocation6] sm:$0xff]
        %v337 = vld [vmem:[#allocation6 + $0x8] sm:$0xff]
        %v338 = vld [vmem:[#allocation6 + $0x10] sm:$0xff]
        %v339 = vld [vmem:[#allocation6 + $0x18] sm:$0xff]
        %v340 = vld [vmem:[#allocation6 + $0x20] sm:$0xff]
        %v341 = vld [vmem:[#allocation6 + $0x28] sm:$0xff]
        %v342 = vld [vmem:[#allocation6 + $0x30] sm:$0xff]
        %v343 = vld [vmem:[#allocation6 + $0x38] sm:$0xff]
        %v344 = vld [vmem:[#allocation6 + $0x40] sm:$0xff]
        %v345 = vld [vmem:[#allocation6 + $0x48] sm:$0xff]
        %v346 = vld [vmem:[#allocation6 + $0x50] sm:$0xff]
        %v347 = vld [vmem:[#allocation6 + $0x58] sm:$0xff]
        %v348 = vld [vmem:[#allocation6 + $0x60] sm:$0xff]
        %v349 = vld [vmem:[#allocation6 + $0x68] sm:$0xff]
        %v350 = vld [vmem:[#allocation6 + $0x70] sm:$0xff]
        %v351 = vld [vmem:[#allocation6 + $0x78] sm:$0xff]
        %v352 = vld [vmem:[%s313] sm:$0x1]
        %v354 = vlaneseq
        %v355 = vshrl.u32 %v354, 7
        %v356 = vsub.s32 0, %v355
        %v357 = vrot.slane %v352, %v356
        %359 = vmatprep.subr.mxu0 0.0
        %360 = vmatpush1.msra.mxu0 %v336
        %361 = vmatprep.subr.mxu0 0.0
        %362 = vmatpush1.msra.mxu0 %v337
        %363 = vmatprep.subr.mxu0 0.0
        %364 = vmatpush1.msra.mxu0 %v338
        %365 = vmatprep.subr.mxu0 0.0
        %366 = vmatpush1.msra.mxu0 %v339
        %367 = vmatprep.subr.mxu0 0.0
        %368 = vmatpush1.msra.mxu0 %v340
        %369 = vmatprep.subr.mxu0 0.0
        %370 = vmatpush1.msra.mxu0 %v341
        %371 = vmatprep.subr.mxu0 0.0
        %372 = vmatpush1.msra.mxu0 %v342
        %373 = vmatprep.subr.mxu0 0.0
        %374 = vmatpush1.msra.mxu0 %v343
        %375 = vmatprep.subr.mxu0 0.0
        %376 = vmatpush1.msra.mxu0 %v344
        %377 = vmatprep.subr.mxu0 0.0
        %378 = vmatpush1.msra.mxu0 %v345
        %379 = vmatprep.subr.mxu0 0.0
        %380 = vmatpush1.msra.mxu0 %v346
        %381 = vmatprep.subr.mxu0 0.0
        %382 = vmatpush1.msra.mxu0 %v347
        %383 = vmatprep.subr.mxu0 0.0
        %384 = vmatpush1.msra.mxu0 %v348
        %385 = vmatprep.subr.mxu0 0.0
        %386 = vmatpush1.msra.mxu0 %v349
        %387 = vmatprep.subr.mxu0 0.0
        %388 = vmatpush1.msra.mxu0 %v350
        %389 = vmatprep.subr.mxu0 0.0
        %390 = vmatpush1.msra.mxu0 %v351
        %391 = vmatprep.subr.mxu0 0.0
        %392 = vmatpush1.msra.mxu0 0.0
        %393 = vmatprep.subr.mxu0 0.0
        %394 = vmatpush1.msra.mxu0 0.0
        %395 = vmatprep.subr.mxu0 0.0
        %396 = vmatpush1.msra.mxu0 0.0
        %397 = vmatprep.subr.mxu0 0.0
        %398 = vmatpush1.msra.mxu0 0.0
        %399 = vmatprep.subr.mxu0 0.0
        %400 = vmatpush1.msra.mxu0 0.0
        %401 = vmatprep.subr.mxu0 0.0
        %402 = vmatpush1.msra.mxu0 0.0
        %403 = vmatprep.subr.mxu0 0.0
        %404 = vmatpush1.msra.mxu0 0.0
        %405 = vmatprep.subr.mxu0 0.0
        %406 = vmatpush1.msra.mxu0 0.0
        %407 = vmatprep.subr.mxu0 0.0
        %408 = vmatpush1.msra.mxu0 0.0
        %409 = vmatprep.subr.mxu0 0.0
        %410 = vmatpush1.msra.mxu0 0.0
        %411 = vmatprep.subr.mxu0 0.0
        %412 = vmatpush1.msra.mxu0 0.0
        %413 = vmatprep.subr.mxu0 0.0
        %414 = vmatpush1.msra.mxu0 0.0
        %415 = vmatprep.subr.mxu0 0.0
        %416 = vmatpush1.msra.mxu0 0.0
        %417 = vmatprep.subr.mxu0 0.0
        %418 = vmatpush1.msra.mxu0 0.0
        %419 = vmatprep.subr.mxu0 0.0
        %420 = vmatpush1.msra.mxu0 0.0
        %421 = vmatprep.subr.mxu0 0.0
        %422 = vmatpush1.msra.mxu0 0.0
        %423 = vmatprep.mubr.f32.mxu0 0.0
        %424 = vmatmul.mubr.f32.gmra.mrb[0].mxu0 %v328
        %v425 = vpop.f32.mrb[0].mxu0
        %v426 = vadd.f32 %v357, %v425
        %v427 = vpop.f32.mrb[0].mxu0
        %428 = vmatprep.mubr.f32.mxu0 0.0
        %429 = vmatmul.mubr.f32.gmra.mrb[0].mxu0 %v329
        %v430 = vpop.f32.mrb[0].mxu0
        %v431 = vadd.f32 %v357, %v430
        %v432 = vpop.f32.mrb[0].mxu0
        %433 = vmatprep.mubr.f32.mxu0 0.0
        %434 = vmatmul.mubr.f32.gmra.mrb[0].mxu0 %v330
        %v435 = vpop.f32.mrb[0].mxu0
        %v436 = vadd.f32 %v357, %v435
        %v437 = vpop.f32.mrb[0].mxu0
        %438 = vmatprep.mubr.f32.mxu0 0.0
        %439 = vmatmul.mubr.f32.gmra.mrb[0].mxu0 %v331
        %v440 = vpop.f32.mrb[0].mxu0
        %v441 = vadd.f32 %v357, %v440
        %v442 = vpop.f32.mrb[0].mxu0
        %443 = vmatprep.mubr.f32.mxu0 0.0
        %444 = vmatmul.mubr.f32.gmra.mrb[0].mxu0 %v332
        %v445 = vpop.f32.mrb[0].mxu0
        %v446 = vadd.f32 %v357, %v445
        %v447 = vpop.f32.mrb[0].mxu0
        %448 = vmatprep.mubr.f32.mxu0 0.0
        %449 = vmatmul.mubr.f32.gmra.mrb[0].mxu0 %v333
        %v450 = vpop.f32.mrb[0].mxu0
        %v451 = vadd.f32 %v357, %v450
        %v452 = vpop.f32.mrb[0].mxu0
        %453 = vmatprep.mubr.f32.mxu0 0.0
        %454 = vmatmul.mubr.f32.gmra.mrb[0].mxu0 %v334
        %v455 = vpop.f32.mrb[0].mxu0
        %v456 = vadd.f32 %v357, %v455
        %v457 = vpop.f32.mrb[0].mxu0
        %458 = vmatprep.mubr.f32.mxu0 0.0
        %459 = vmatmul.mubr.f32.gmra.mrb[0].mxu0 %v335
        %v460 = vpop.f32.mrb[0].mxu0
        %v461 = vadd.f32 %v357, %v460
        %v462 = vpop.f32.mrb[0].mxu0
        %463 = vdwg.mxu0
        %v464 = vmul.f32 %v426, 0.5
        %v465 = vmul.f32 %v431, 0.5
        %v466 = vmul.f32 %v436, 0.5
        %v467 = vmul.f32 %v441, 0.5
        %v468 = vmul.f32 %v446, 0.5
        %v469 = vmul.f32 %v451, 0.5
        %v470 = vmul.f32 %v456, 0.5
        %v471 = vmul.f32 %v461, 0.5
        %v472 = vmul.f32 %v426, 0.70710677
        %v473 = vmul.f32 %v431, 0.70710677
        %v474 = vmul.f32 %v436, 0.70710677
        %v475 = vmul.f32 %v441, 0.70710677
        %v476 = vmul.f32 %v446, 0.70710677
        %v477 = vmul.f32 %v451, 0.70710677
        %v478 = vmul.f32 %v456, 0.70710677
        %v479 = vmul.f32 %v461, 0.70710677
        %v480 = verf.f32.pop %v472
        %v481 = verf.f32.pop %v473
        %v482 = verf.f32.pop %v474
        %v483 = verf.f32.pop %v475
        %v484 = verf.f32.pop %v476
        %v485 = verf.f32.pop %v477
        %v486 = verf.f32.pop %v478
        %v487 = verf.f32.pop %v479
        %v488 = vadd.f32 %v480, 1.0
        %v489 = vadd.f32 %v481, 1.0
        %v490 = vadd.f32 %v482, 1.0
        %v491 = vadd.f32 %v483, 1.0
        %v492 = vadd.f32 %v484, 1.0
        %v493 = vadd.f32 %v485, 1.0
        %v494 = vadd.f32 %v486, 1.0
        %v495 = vadd.f32 %v487, 1.0
        %v496 = vmul.f32 %v464, %v488
        %v497 = vmul.f32 %v465, %v489
        %v498 = vmul.f32 %v466, %v490
        %v499 = vmul.f32 %v467, %v491
        %v500 = vmul.f32 %v468, %v492
        %v501 = vmul.f32 %v469, %v493
        %v502 = vmul.f32 %v470, %v494
        %v503 = vmul.f32 %v471, %v495
        %v504 = vld [vmem:[#allocation2] sm:$0xff]
        %v505 = vld [vmem:[#allocation2 + $0x8] sm:$0xff]
        %v506 = vld [vmem:[#allocation2 + $0x10] sm:$0xff]
        %v507 = vld [vmem:[#allocation2 + $0x18] sm:$0xff]
        %v508 = vld [vmem:[#allocation2 + $0x20] sm:$0xff]
        %v509 = vld [vmem:[#allocation2 + $0x28] sm:$0xff]
        %v510 = vld [vmem:[#allocation2 + $0x30] sm:$0xff]
        %v511 = vld [vmem:[#allocation2 + $0x38] sm:$0xff]
        %v512 = vld [vmem:[#allocation8] sm:$0xff]
        %v513 = vld [vmem:[#allocation8 + $0x8] sm:$0xff]
        %v514 = vld [vmem:[#allocation8 + $0x10] sm:$0xff]
        %v515 = vld [vmem:[#allocation8 + $0x18] sm:$0xff]
        %v516 = vld [vmem:[#allocation8 + $0x20] sm:$0xff]
        %v517 = vld [vmem:[#allocation8 + $0x28] sm:$0xff]
        %v518 = vld [vmem:[#allocation8 + $0x30] sm:$0xff]
        %v519 = vld [vmem:[#allocation8 + $0x38] sm:$0xff]
        %v520 = vld [vmem:[#allocation8 + $0x40] sm:$0xff]
        %v521 = vld [vmem:[#allocation8 + $0x48] sm:$0xff]
        %v522 = vld [vmem:[#allocation8 + $0x50] sm:$0xff]
        %v523 = vld [vmem:[#allocation8 + $0x58] sm:$0xff]
        %v524 = vld [vmem:[#allocation8 + $0x60] sm:$0xff]
        %v525 = vld [vmem:[#allocation8 + $0x68] sm:$0xff]
        %v526 = vld [vmem:[#allocation8 + $0x70] sm:$0xff]
        %v527 = vld [vmem:[#allocation8 + $0x78] sm:$0xff]
        %528 = vmatprep.subr.mxu0 0.0
        %529 = vmatpush1.msra.mxu0 %v512
        %530 = vmatprep.subr.mxu0 0.0
        %531 = vmatpush1.msra.mxu0 %v513
        %532 = vmatprep.subr.mxu0 0.0
        %533 = vmatpush1.msra.mxu0 %v514
        %534 = vmatprep.subr.mxu0 0.0
        %535 = vmatpush1.msra.mxu0 %v515
        %536 = vmatprep.subr.mxu0 0.0
        %537 = vmatpush1.msra.mxu0 %v516
        %538 = vmatprep.subr.mxu0 0.0
        %539 = vmatpush1.msra.mxu0 %v517
        %540 = vmatprep.subr.mxu0 0.0
        %541 = vmatpush1.msra.mxu0 %v518
        %542 = vmatprep.subr.mxu0 0.0
        %543 = vmatpush1.msra.mxu0 %v519
        %544 = vmatprep.subr.mxu0 0.0
        %545 = vmatpush1.msra.mxu0 %v520
        %546 = vmatprep.subr.mxu0 0.0
        %547 = vmatpush1.msra.mxu0 %v521
        %548 = vmatprep.subr.mxu0 0.0
        %549 = vmatpush1.msra.mxu0 %v522
        %550 = vmatprep.subr.mxu0 0.0
        %551 = vmatpush1.msra.mxu0 %v523
        %552 = vmatprep.subr.mxu0 0.0
        %553 = vmatpush1.msra.mxu0 %v524
        %554 = vmatprep.subr.mxu0 0.0
        %555 = vmatpush1.msra.mxu0 %v525
        %556 = vmatprep.subr.mxu0 0.0
        %557 = vmatpush1.msra.mxu0 %v526
        %558 = vmatprep.subr.mxu0 0.0
        %559 = vmatpush1.msra.mxu0 %v527
        %560 = vmatprep.subr.mxu0 0.0
        %561 = vmatpush1.msra.mxu0 0.0
        %562 = vmatprep.subr.mxu0 0.0
        %563 = vmatpush1.msra.mxu0 0.0
        %564 = vmatprep.subr.mxu0 0.0
        %565 = vmatpush1.msra.mxu0 0.0
        %566 = vmatprep.subr.mxu0 0.0
        %567 = vmatpush1.msra.mxu0 0.0
        %568 = vmatprep.subr.mxu0 0.0
        %569 = vmatpush1.msra.mxu0 0.0
        %570 = vmatprep.subr.mxu0 0.0
        %571 = vmatpush1.msra.mxu0 0.0
        %572 = vmatprep.subr.mxu0 0.0
        %573 = vmatpush1.msra.mxu0 0.0
        %574 = vmatprep.subr.mxu0 0.0
        %575 = vmatpush1.msra.mxu0 0.0
        %576 = vmatprep.subr.mxu0 0.0
        %577 = vmatpush1.msra.mxu0 0.0
        %578 = vmatprep.subr.mxu0 0.0
        %579 = vmatpush1.msra.mxu0 0.0
        %580 = vmatprep.subr.mxu0 0.0
        %581 = vmatpush1.msra.mxu0 0.0
        %582 = vmatprep.subr.mxu0 0.0
        %583 = vmatpush1.msra.mxu0 0.0
        %584 = vmatprep.subr.mxu0 0.0
        %585 = vmatpush1.msra.mxu0 0.0
        %586 = vmatprep.subr.mxu0 0.0
        %587 = vmatpush1.msra.mxu0 0.0
        %588 = vmatprep.subr.mxu0 0.0
        %589 = vmatpush1.msra.mxu0 0.0
        %590 = vmatprep.subr.mxu0 0.0
        %591 = vmatpush1.msra.mxu0 0.0
        %592 = vmatprep.mubr.f32.mxu0 0.0
        %593 = vmatmul.mubr.f32.gmra.mrb[0].mxu0 %v496
        %v594 = vpop.f32.mrb[0].mxu0
        %v595 = vadd.f32 0.0, %v594
        %v596 = vpop.f32.mrb[0].mxu0
        %597 = vmatprep.mubr.f32.mxu0 0.0
        %598 = vmatmul.mubr.f32.gmra.mrb[0].mxu0 %v497
        %v599 = vpop.f32.mrb[0].mxu0
        %v600 = vadd.f32 0.0, %v599
        %v601 = vpop.f32.mrb[0].mxu0
        %602 = vmatprep.mubr.f32.mxu0 0.0
        %603 = vmatmul.mubr.f32.gmra.mrb[0].mxu0 %v498
        %v604 = vpop.f32.mrb[0].mxu0
        %v605 = vadd.f32 0.0, %v604
        %v606 = vpop.f32.mrb[0].mxu0
        %607 = vmatprep.mubr.f32.mxu0 0.0
        %608 = vmatmul.mubr.f32.gmra.mrb[0].mxu0 %v499
        %v609 = vpop.f32.mrb[0].mxu0
        %v610 = vadd.f32 0.0, %v609
        %v611 = vpop.f32.mrb[0].mxu0
        %612 = vmatprep.mubr.f32.mxu0 0.0
        %613 = vmatmul.mubr.f32.gmra.mrb[0].mxu0 %v500
        %v614 = vpop.f32.mrb[0].mxu0
        %v615 = vadd.f32 0.0, %v614
        %v616 = vpop.f32.mrb[0].mxu0
        %617 = vmatprep.mubr.f32.mxu0 0.0
        %618 = vmatmul.mubr.f32.gmra.mrb[0].mxu0 %v501
        %v619 = vpop.f32.mrb[0].mxu0
        %v620 = vadd.f32 0.0, %v619
        %v621 = vpop.f32.mrb[0].mxu0
        %622 = vmatprep.mubr.f32.mxu0 0.0
        %623 = vmatmul.mubr.f32.gmra.mrb[0].mxu0 %v502
        %v624 = vpop.f32.mrb[0].mxu0
        %v625 = vadd.f32 0.0, %v624
        %v626 = vpop.f32.mrb[0].mxu0
        %627 = vmatprep.mubr.f32.mxu0 0.0
        %628 = vmatmul.mubr.f32.gmra.mrb[0].mxu0 %v503
        %v629 = vpop.f32.mrb[0].mxu0
        %v630 = vadd.f32 0.0, %v629
        %v631 = vpop.f32.mrb[0].mxu0
        %632 = vdwg.mxu0
        %v633 = vadd.f32 %v504, %v595
        %v634 = vadd.f32 %v505, %v600
        %v635 = vadd.f32 %v506, %v605
        %v636 = vadd.f32 %v507, %v610
        %v637 = vadd.f32 %v508, %v615
        %v638 = vadd.f32 %v509, %v620
        %v639 = vadd.f32 %v510, %v625
        %v640 = vadd.f32 %v511, %v630
        %641 = vst [vmem:[#allocation2] sm:$0xff] %v633
        %642 = vst [vmem:[#allocation2 + $0x8] sm:$0xff] %v634
        %643 = vst [vmem:[#allocation2 + $0x10] sm:$0xff] %v635
        %644 = vst [vmem:[#allocation2 + $0x18] sm:$0xff] %v636
        %645 = vst [vmem:[#allocation2 + $0x20] sm:$0xff] %v637
        %646 = vst [vmem:[#allocation2 + $0x28] sm:$0xff] %v638
        %647 = vst [vmem:[#allocation2 + $0x30] sm:$0xff] %v639
        %648 = vst [vmem:[#allocation2 + $0x38] sm:$0xff] %v640
        // Predicated region
        $region57: #{tpu_custom_call.1} parent=39 // pred_check
          %p649 = pneg %p316
        $region58: #{tpu_custom_call.1} parent=39 // pred_check_branch
          %651 = sbr.rel (%p649) target = $region60
        $region59: #{tpu_custom_call.1} parent=39 // pred_region
          %v652 = vld [vmem:[#allocation2] sm:$0xff]
          %v653 = vld [vmem:[#allocation2 + $0x8] sm:$0xff]
          %v654 = vld [vmem:[#allocation2 + $0x10] sm:$0xff]
          %v655 = vld [vmem:[#allocation2 + $0x18] sm:$0xff]
          %v656 = vld [vmem:[#allocation2 + $0x20] sm:$0xff]
          %v657 = vld [vmem:[#allocation2 + $0x28] sm:$0xff]
          %v658 = vld [vmem:[#allocation2 + $0x30] sm:$0xff]
          %v659 = vld [vmem:[#allocation2 + $0x38] sm:$0xff]
          %v660 = vld [vmem:[%s4] sm:$0x1]
          %v662 = vlaneseq
          %v663 = vshrl.u32 %v662, 7
          %v664 = vsub.s32 0, %v663
          %v665 = vrot.slane %v660, %v664
          %v667 = vadd.f32 %v652, %v665
          %v668 = vadd.f32 %v653, %v665
          %v669 = vadd.f32 %v654, %v665
          %v670 = vadd.f32 %v655, %v665
          %v671 = vadd.f32 %v656, %v665
          %v672 = vadd.f32 %v657, %v665
          %v673 = vadd.f32 %v658, %v665
          %v674 = vadd.f32 %v659, %v665
          %675 = vst [vmem:[%s309] sm:$0xff] %v667
          %676 = vst [vmem:[%s309 + $0x8] sm:$0xff] %v668
          %677 = vst [vmem:[%s309 + $0x10] sm:$0xff] %v669
          %678 = vst [vmem:[%s309 + $0x18] sm:$0xff] %v670
          %679 = vst [vmem:[%s309 + $0x20] sm:$0xff] %v671
          %680 = vst [vmem:[%s309 + $0x28] sm:$0xff] %v672
          %681 = vst [vmem:[%s309 + $0x30] sm:$0xff] %v673
          %682 = vst [vmem:[%s309 + $0x38] sm:$0xff] %v674
        $region60: #{tpu_custom_call.1} parent=39 // pred_fallthru
          _
        %s683 = sand.u32 %s168, 1
        %s684 = scalar_lea.sflag [#allocation5], %s683
        %s685 = sand.u32 %s168, 1
        %s686 = smul.addr %s685, 64
        %s687 = scalar_lea.vmem [#allocation9], %s686
        // Predicated region
        $region61: #{tpu_custom_call.1} parent=39 // pred_check
          %p688 = pneg %p178
        $region62: #{tpu_custom_call.1} parent=39 // pred_check_branch
          %690 = sbr.rel (%p688) target = $region64
        $region63: #{tpu_custom_call.1} parent=39 // pred_region
          %s691 = smul.u32 8, %s27
          %s693 = ssub.s32 1024, 1024
          %694 = vsyncadd %s684, %s693
          %s695 = smul.addr %s691, 128
          %s696 = scalar_lea.hbm %s5, %s695
          %s697 = sshll.u32 %s687, 4
          %s698 = int_to_ptr.vmem [resolvable:$true] %s697
          %703 = dma.vmem_to_hbm [thread:$0]  %s698, 1024, %s696, %s684, 128, 128, 8
        $region64: #{tpu_custom_call.1} parent=39 // pred_fallthru
          _
      $region40: #{tpu_custom_call.1} parent=5 // pred_fallthru
        _
      %p704 = scmp.le.s32.totalorder 2, %s18
      // Predicated region
      $region65: #{tpu_custom_call.1} parent=5 // pred_check
        %p705 = pneg %p704
      $region66: #{tpu_custom_call.1} parent=5 // pred_check_branch
        %707 = sbr.rel (%p705) target = $region68
      $region67: #{tpu_custom_call.1} parent=5 // pred_region
        %s708 = ssub.s32 %s18, 2
        // Predicated region
        $region69: #{tpu_custom_call.1} parent=67 // pred_check
          %p709 = pneg %p184
        $region70: #{tpu_custom_call.1} parent=67 // pred_check_branch
          %711 = sbr.rel (%p709) target = $region72
        $region71: #{tpu_custom_call.1} parent=67 // pred_region
          %s712 = sand.u32 %s169, 1
          %s713 = scalar_lea.sflag [#allocation5], %s712
          %s714 = sand.u32 %s169, 1
          %s715 = smul.addr %s714, 64
          %s716 = scalar_lea.vmem [#allocation9], %s715
          %717 = dma.done %s713, 1024
        $region72: #{tpu_custom_call.1} parent=67 // pred_fallthru
          _
      $region68: #{tpu_custom_call.1} parent=5 // pred_fallthru
        _
    $region6: #{tpu_custom_call.1} parent=1 // loop_footer
      %s22 = sadd.s32 1, %s18
    $region7: #{tpu_custom_call.1} parent=1 // loop_footer_branch
      %17 = sbr.rel target = $region3
    $region8: #{tpu_custom_call.1} parent=1 // loop_exit
      _
    %718 = vsyncpa [#allocation4], 1
    %s719 = scalar_lea.sflag [#allocation4], 1
    %720 = vsyncpa %s719, 1
    %721 = vsyncpa [#allocation7], 1
    %722 = vsyncpa [#allocation5], 1
    %s723 = scalar_lea.sflag [#allocation5], 1
    %724 = vsyncpa %s723, 1

</llo_original>
